<compile_context>
chip_gen: v6e
topology: v6e:2x2x1
jax: 0.10.0
libtpu: 0.0.40
codegen_flags: <defaults>
</compile_context>

<pallas_src>
import functools
import math

import jax
import jax.numpy as jnp
from jax.experimental import pallas as pl
from jax.experimental.pallas import tpu as pltpu


# ----------------------------------------------------------------------------
# Tile helper: largest multiple of `align` dividing `dim` that is <= pref.
# Returns dim itself when dim <= pref (full-extent blocks are always legal);
# returns None when no aligned divisor exists (caller pads).
# ----------------------------------------------------------------------------
def _pick_tile(dim, pref, align):
    if dim <= pref:
        return dim
    c = (pref // align) * align
    while c >= align:
        if dim % c == 0:
            return c
        c -= align
    return None


# ----------------------------------------------------------------------------
# Kernel 1: fused QKV projection + per-head attention.  grid = (B, H).
#   wqkv_t : [H, D, 3*hd]   (head-major, q columns pre-scaled by 1/sqrt(hd))
#   bqkv   : [H, 1, 3*hd]
#   out    : [B, H, L, hd]
# ----------------------------------------------------------------------------
def _qkv_attn_kernel(x_ref, bias_ref, wqkv_ref, bqkv_ref, o_ref, *, head_dim):
    x = x_ref[0]                                           # [L, D] native dtype
    bias = bias_ref[0]                                     # [1, L] f32 (0/-1e30)

    qkv = jnp.dot(x, wqkv_ref[0], preferred_element_type=jnp.float32)
    qkv = (qkv + bqkv_ref[0]).astype(x.dtype)              # [L, 3*hd]
    q = qkv[:, :head_dim]
    k = qkv[:, head_dim:2 * head_dim]
    v = qkv[:, 2 * head_dim:]

    # q @ k^T via dot_general contracting hd (no XLU transpose); scale is
    # already baked into the q weights.
    s = jax.lax.dot_general(q, k, (((1,), (1,)), ((), ())),
                            preferred_element_type=jnp.float32) + bias
    s = s - jnp.max(s, axis=-1, keepdims=True)
    p = jnp.exp(s)
    p = p / jnp.sum(p, axis=-1, keepdims=True)             # exact softmax
    o = jnp.dot(p.astype(v.dtype), v, preferred_element_type=jnp.float32)
    o_ref[0, 0] = o.astype(o_ref.dtype)


def qkv_attention(x, mask_bias, wqkv_t, bqkv, heads):
    B, L, D = x.shape
    hd = D // heads
    return pl.pallas_call(
        functools.partial(_qkv_attn_kernel, head_dim=hd),
        out_shape=jax.ShapeDtypeStruct((B, heads, L, hd), x.dtype),
        grid=(B, heads),
        in_specs=[
            pl.BlockSpec((1, L, D), lambda b, h: (b, 0, 0)),      # x (resident over h)
            pl.BlockSpec((1, 1, L), lambda b, h: (b, 0, 0)),      # key-pad bias
            pl.BlockSpec((1, D, 3 * hd), lambda b, h: (h, 0, 0)),  # per-head W_qkv
            pl.BlockSpec((1, 1, 3 * hd), lambda b, h: (h, 0, 0)),  # per-head b_qkv
        ],
        out_specs=pl.BlockSpec((1, 1, L, hd), lambda b, h: (b, h, 0, 0)),
        compiler_params=pltpu.CompilerParams(
            dimension_semantics=("parallel", "parallel")),
    )(x, mask_bias, wqkv_t, bqkv)


# ----------------------------------------------------------------------------
# Kernel 2: output projection (reduction over heads) + bias + residual + LN.
#   grid = (B, H), H innermost reduction; f32 VMEM accumulator [L, D].
# ----------------------------------------------------------------------------
def _outproj_add_ln_kernel(attn_ref, wout_ref, bout_ref, res_ref, g_ref,
                           beta_ref, o_ref, acc_ref, *, eps):
    @pl.when(pl.program_id(1) == 0)
    def _():
        acc_ref[...] = jnp.zeros_like(acc_ref)

    acc_ref[...] += jnp.dot(attn_ref[0, 0], wout_ref[0],
                            preferred_element_type=jnp.float32)

    @pl.when(pl.program_id(1) == pl.num_programs(1) - 1)
    def _():
        y = acc_ref[...] + bout_ref[...] + res_ref[0].astype(jnp.float32)
        mean = jnp.mean(y, axis=-1, keepdims=True)
        yc = y - mean
        var = jnp.mean(yc * yc, axis=-1, keepdims=True)
        y = yc * jax.lax.rsqrt(var + eps)
        y = y * g_ref[...] + beta_ref[...]
        o_ref[0] = y.astype(o_ref.dtype)


def outproj_add_layernorm(attn4, wout3, bout, residual, gamma, beta, eps=1e-5):
    B, H, L, hd = attn4.shape
    D = wout3.shape[-1]
    return pl.pallas_call(
        functools.partial(_outproj_add_ln_kernel, eps=eps),
        out_shape=jax.ShapeDtypeStruct((B, L, D), residual.dtype),
        grid=(B, H),
        in_specs=[
            pl.BlockSpec((1, 1, L, hd), lambda b, h: (b, h, 0, 0)),  # attn head
            pl.BlockSpec((1, hd, D), lambda b, h: (h, 0, 0)),        # W_out head
            pl.BlockSpec((1, D), lambda b, h: (0, 0)),               # b_out
            pl.BlockSpec((1, L, D), lambda b, h: (b, 0, 0)),         # residual x
            pl.BlockSpec((1, D), lambda b, h: (0, 0)),               # LN gamma
            pl.BlockSpec((1, D), lambda b, h: (0, 0)),               # LN beta
        ],
        out_specs=pl.BlockSpec((1, L, D), lambda b, h: (b, 0, 0)),
        scratch_shapes=[pltpu.VMEM((L, D), jnp.float32)],
        compiler_params=pltpu.CompilerParams(
            dimension_semantics=("parallel", "arbitrary")),
    )(attn4, wout3, bout, residual, gamma, beta)


# ----------------------------------------------------------------------------
# Kernel 3: fused feed-forward  LN(x + ReLU(x@W1 + b1)@W2 + b2).
#   grid = (M//bm, dff//bdff), dff innermost reduction; the [bm, bdff] hidden
#   never leaves VMEM.  x block doubles as the residual (index constant over
#   the dff axis -> fetched once per row-tile).
# ----------------------------------------------------------------------------
def _ffn_ln_kernel(x_ref, w1_ref, b1_ref, w2_ref, b2_ref, g_ref, beta_ref,
                   o_ref, acc_ref, *, eps):
    @pl.when(pl.program_id(1) == 0)
    def _():
        acc_ref[...] = jnp.zeros_like(acc_ref)

    x = x_ref[...]
    h = jnp.dot(x, w1_ref[...], preferred_element_type=jnp.float32)
    h = jnp.maximum(h + b1_ref[...], 0.0)
    acc_ref[...] += jnp.dot(h.astype(x.dtype), w2_ref[...],
                            preferred_element_type=jnp.float32)

    @pl.when(pl.program_id(1) == pl.num_programs(1) - 1)
    def _():
        y = acc_ref[...] + b2_ref[...] + x_ref[...].astype(jnp.float32)
        mean = jnp.mean(y, axis=-1, keepdims=True)
        yc = y - mean
        var = jnp.mean(yc * yc, axis=-1, keepdims=True)
        y = yc * jax.lax.rsqrt(var + eps)
        y = y * g_ref[...] + beta_ref[...]
        o_ref[...] = y.astype(o_ref.dtype)


def ffn_add_layernorm(x2d, w1_t, b1, w2_t, b2, gamma, beta,
                      eps=1e-5, tm=256, tdff=512):
    # NOTE: tile defaults are conservative for v7x's 64 MiB VMEM; on
    # v5e/v6e (128 MiB) tm/tdff can be grown to amortize per-step overhead.
    M, D = x2d.shape
    dff = w1_t.shape[1]
    align_m = 8 if x2d.dtype.itemsize >= 4 else 16   # bf16 min sublane tile = 16
    bm = _pick_tile(M, tm, align_m)
    Mp = M
    if bm is None:                                   # awkward M: pad rows, slice after
        bm = (tm // align_m) * align_m
        Mp = pl.cdiv(M, bm) * bm
        x2d = jnp.pad(x2d, ((0, Mp - M), (0, 0)))
    bdff = _pick_tile(dff, tdff, 128)
    if bdff is None:
        bdff = dff                                   # full reduction extent (correct)

    out = pl.pallas_call(
        functools.partial(_ffn_ln_kernel, eps=eps),
        out_shape=jax.ShapeDtypeStruct((Mp, D), x2d.dtype),
        grid=(Mp // bm, dff // bdff),
        in_specs=[
            pl.BlockSpec((bm, D), lambda i, j: (i, 0)),      # x (and residual)
            pl.BlockSpec((D, bdff), lambda i, j: (0, j)),    # W1^T tile
            pl.BlockSpec((1, bdff), lambda i, j: (0, j)),    # b1 tile
            pl.BlockSpec((bdff, D), lambda i, j: (j, 0)),    # W2^T tile
            pl.BlockSpec((1, D), lambda i, j: (0, 0)),       # b2
            pl.BlockSpec((1, D), lambda i, j: (0, 0)),       # LN gamma
            pl.BlockSpec((1, D), lambda i, j: (0, 0)),       # LN beta
        ],
        out_specs=pl.BlockSpec((bm, D), lambda i, j: (i, 0)),
        scratch_shapes=[pltpu.VMEM((bm, D), jnp.float32)],
        compiler_params=pltpu.CompilerParams(
            dimension_semantics=("parallel", "arbitrary")),
    )(x2d, w1_t, b1, w2_t, b2, gamma, beta)
    return out[:M] if Mp != M else out


# ----------------------------------------------------------------------------
# Encoder layer / full transformer (glue in plain JAX — no transposes here)
# ----------------------------------------------------------------------------
def encoder_layer(x, mask_bias, p, heads):
    B, L, D = x.shape
    attn4 = qkv_attention(x, mask_bias, p["wqkv_t"], p["bqkv"], heads)
    x1 = outproj_add_layernorm(attn4, p["wout_t"], p["bout"], x,
                               p["ln1_g"], p["ln1_b"])
    x2 = ffn_add_layernorm(x1.reshape(B * L, D), p["w1_t"], p["b1"],
                           p["w2_t"], p["b2"], p["ln2_g"], p["ln2_b"])
    return x2.reshape(B, L, D)


def prepare_params(params, heads, compute_dtype=None):
    """One-time weight repack (outside the hot path):
       - QKV weights reordered head-major to [H, D, 3*hd]; softmax scale
         1/sqrt(hd) folded into the q columns (and q bias).
       - out-proj transposed and split per head: [H, hd, D].
       - FF weights pre-transposed; biases reshaped 2-D.
       - optional cast of all matmul operands to `compute_dtype` (e.g. bf16
         for full-rate MXU on v6e/v7x); LN params stay f32."""
    cast = ((lambda a: a.astype(compute_dtype)) if compute_dtype is not None
            else (lambda a: a))
    out = []
    for p in params:
        D = p["out_proj_w"].shape[0]
        hd = D // heads
        scale = 1.0 / math.sqrt(hd)
        w, b = p["in_proj_w"], p["in_proj_b"]
        wq, wk, wv = w[:D] * scale, w[D:2 * D], w[2 * D:]
        bq, bk, bv = b[:D] * scale, b[D:2 * D], b[2 * D:]
        ph_w = lambda m: m.reshape(heads, hd, D)
        ph_b = lambda v: v.reshape(heads, hd)
        wqkv = jnp.concatenate([ph_w(wq), ph_w(wk), ph_w(wv)], axis=1)  # [H,3hd,D]
        wqkv_t = jnp.transpose(wqkv, (0, 2, 1))                         # [H,D,3hd]
        bqkv = jnp.concatenate([ph_b(bq), ph_b(bk), ph_b(bv)],
                               axis=1)[:, None, :]                      # [H,1,3hd]
        out.append({
            "wqkv_t": cast(wqkv_t),
            "bqkv": cast(bqkv),
            "wout_t": cast(jnp.transpose(p["out_proj_w"]).reshape(heads, hd, D)),
            "bout": cast(p["out_proj_b"].reshape(1, -1)),
            "ln1_g": p["ln1_g"].reshape(1, -1).astype(jnp.float32),
            "ln1_b": p["ln1_b"].reshape(1, -1).astype(jnp.float32),
            "w1_t": cast(jnp.transpose(p["ff1_w"])),
            "b1": cast(p["ff1_b"].reshape(1, -1)),
            "w2_t": cast(jnp.transpose(p["ff2_w"])),
            "b2": cast(p["ff2_b"].reshape(1, -1)),
            "ln2_g": p["ln2_g"].reshape(1, -1).astype(jnp.float32),
            "ln2_b": p["ln2_b"].reshape(1, -1).astype(jnp.float32),
        })
    return out


def transformer_forward(x, m, prepped_params, heads):
    # m: [B, L] bool, True = padded key position (ignored by attention).
    # NOTE: a fully-masked row would yield NaN (matches PyTorch behavior).
    B, L = m.shape
    mask_bias = jnp.where(m, jnp.float32(-1e30), jnp.float32(0.0)).reshape(B, 1, L)
    for p in prepped_params:
        x = encoder_layer(x, mask_bias, p, heads)
    return x


# ----------------------------------------------------------------------------
# Pure-JAX reference (same math) for a correctness check
# ----------------------------------------------------------------------------
def _ref_ln(x, g, b, eps=1e-5):
    mu = x.mean(-1, keepdims=True)
    xc = x - mu
    var = (xc * xc).mean(-1, keepdims=True)
    return xc * jax.lax.rsqrt(var + eps) * g + b


def reference_forward(x, m, params, heads):
    B, L, D = x.shape
    hd = D // heads
    bias = jnp.where(m, -1e30, 0.0)[:, None, None, :]           # [B,1,1,L]
    for p in params:
        qkv = x @ p["in_proj_w"].T + p["in_proj_b"]
        q, k, v = jnp.split(qkv, 3, axis=-1)
        sh = lambda t: t.reshape(B, L, heads, hd).transpose(0, 2, 1, 3)
        q, k, v = sh(q), sh(k), sh(v)
        s = jnp.einsum("bhqd,bhkd->bhqk", q, k) / math.sqrt(hd) + bias
        s = s - s.max(-1, keepdims=True)
        pw = jnp.exp(s)
        pw = pw / pw.sum(-1, keepdims=True)
        o = jnp.einsum("bhqk,bhkd->bhqd", pw, v)
        o = o.transpose(0, 2, 1, 3).reshape(B, L, D)
        o = o @ p["out_proj_w"].T + p["out_proj_b"]
        x1 = _ref_ln(x + o, p["ln1_g"], p["ln1_b"])
        h = jnp.maximum(x1 @ p["ff1_w"].T + p["ff1_b"], 0.0)
        h = h @ p["ff2_w"].T + p["ff2_b"]
        x = _ref_ln(x1 + h, p["ln2_g"], p["ln2_b"])
    return x


# ----------------------------------------------------------------------------
# Deterministic parameter init (synthetic, not a checkpoint)
# ----------------------------------------------------------------------------
def init_params(key, layers, dim, dff):
    params = []
    for _ in range(layers):
        keys = jax.random.split(key, 5)
        key = keys[0]
        params.append({
            "in_proj_w": 0.05 * jax.random.normal(keys[1], (3 * dim, dim), jnp.float32),
            "in_proj_b": jnp.zeros((3 * dim,), jnp.float32),
            "out_proj_w": 0.05 * jax.random.normal(keys[2], (dim, dim), jnp.float32),
            "out_proj_b": jnp.zeros((dim,), jnp.float32),
            "ln1_g": jnp.ones((dim,), jnp.float32),
            "ln1_b": jnp.zeros((dim,), jnp.float32),
            "ff1_w": 0.05 * jax.random.normal(keys[3], (dff, dim), jnp.float32),
            "ff1_b": jnp.zeros((dff,), jnp.float32),
            "ff2_w": 0.05 * jax.random.normal(keys[4], (dim, dff), jnp.float32),
            "ff2_b": jnp.zeros((dim,), jnp.float32),
            "ln2_g": jnp.ones((dim,), jnp.float32),
            "ln2_b": jnp.zeros((dim,), jnp.float32),
        })
    return params


if __name__ == "__main__":
    LAYERS, DIM, HEADS, DFF = 2, 32, 4, 64
    B, L = 2, 8

    key = jax.random.PRNGKey(0)
    kx, kp = jax.random.split(key)
    x = jax.random.normal(kx, (B, L, DIM), jnp.float32)
    # key-padding mask: last 2 positions of each sequence are padded
    m = jnp.zeros((B, L), jnp.bool_).at[:, -2:].set(True)

    params = init_params(kp, LAYERS, DIM, DFF)
    ref = reference_forward(x, m, params, HEADS)

    # f32 compute path (tight parity with the PyTorch module).
    prepped = prepare_params(params, HEADS)
    out = jax.block_until_ready(transformer_forward(x, m, prepped, HEADS))
    assert out.shape == (B, L, DIM)
    assert jnp.allclose(out, ref, rtol=1e-3, atol=1e-3), (
        "f32 mismatch vs pure-JAX reference")

    # bf16 compute path (full-rate MXU on v6e/v7x); looser tolerance.
    prepped_bf16 = prepare_params(params, HEADS, compute_dtype=jnp.bfloat16)
    out_bf16 = jax.block_until_ready(
        transformer_forward(x.astype(jnp.bfloat16), m, prepped_bf16, HEADS))
    assert jnp.allclose(out_bf16.astype(jnp.float32), ref, rtol=1e-1, atol=1e-1), (
        "bf16 mismatch vs pure-JAX reference")

    print("KERNEL_OK")
</pallas_src>

<mosaic_0001>
module attributes {stable_mosaic.version = 11 : i64} {
  func.func @_qkv_attn_kernel(%arg0: i32, %arg1: i32, %arg2: memref<1x8x32xf32, #tpu.memory_space<vmem>>, %arg3: memref<1x1x8xf32, #tpu.memory_space<vmem>>, %arg4: memref<1x32x24xf32, #tpu.memory_space<vmem>>, %arg5: memref<1x1x24xf32, #tpu.memory_space<vmem>>, %arg6: memref<1x1x8x8xf32, #tpu.memory_space<vmem>>) attributes {dimension_semantics = [#tpu.dimension_semantics<parallel>, #tpu.dimension_semantics<parallel>], iteration_bounds = array<i64: 2, 4>, scalar_prefetch = 0 : i64, scratch_operands = 0 : i64, tpu.core_type = #tpu.core_type<tc>, window_params = [{transform_indices = @transform_0, window_bounds = array<i64: 1, 8, 32>}, {transform_indices = @transform_1, window_bounds = array<i64: 1, 1, 8>}, {transform_indices = @transform_2, window_bounds = array<i64: 1, 32, 24>}, {transform_indices = @transform_3, window_bounds = array<i64: 1, 1, 24>}, {transform_indices = @transform_4, window_bounds = array<i64: 1, 1, 8, 8>}]} {
    %c0 = arith.constant 0 : index
    %c0_0 = arith.constant 0 : index
    %c0_1 = arith.constant 0 : index
    %0 = vector.load %arg2[%c0, %c0_0, %c0_1] : memref<1x8x32xf32, #tpu.memory_space<vmem>>, vector<1x8x32xf32>
    %1 = vector.shape_cast %0 : vector<1x8x32xf32> to vector<8x32xf32>
    %c0_2 = arith.constant 0 : index
    %c0_3 = arith.constant 0 : index
    %c0_4 = arith.constant 0 : index
    %2 = vector.load %arg3[%c0_2, %c0_3, %c0_4] : memref<1x1x8xf32, #tpu.memory_space<vmem>>, vector<1x1x8xf32>
    %3 = vector.shape_cast %2 : vector<1x1x8xf32> to vector<1x8xf32>
    %c0_5 = arith.constant 0 : index
    %c0_6 = arith.constant 0 : index
    %c0_7 = arith.constant 0 : index
    %4 = vector.load %arg4[%c0_5, %c0_6, %c0_7] : memref<1x32x24xf32, #tpu.memory_space<vmem>>, vector<1x32x24xf32>
    %5 = vector.shape_cast %4 : vector<1x32x24xf32> to vector<32x24xf32>
    %cst = arith.constant dense<0.000000e+00> : vector<8x24xf32>
    %6 = tpu.matmul %1, %5, %cst {dimension_numbers = #tpu.dot_dimension_numbers<[1], [0], [0], [1], [0, 0, 1, 1], [], []>} : vector<8x32xf32>, vector<32x24xf32>, vector<8x24xf32> -> vector<8x24xf32>
    %c0_8 = arith.constant 0 : index
    %c0_9 = arith.constant 0 : index
    %c0_10 = arith.constant 0 : index
    %7 = vector.load %arg5[%c0_8, %c0_9, %c0_10] : memref<1x1x24xf32, #tpu.memory_space<vmem>>, vector<1x1x24xf32>
    %8 = vector.shape_cast %7 : vector<1x1x24xf32> to vector<1x24xf32>
    %9 = vector.broadcast %8 : vector<1x24xf32> to vector<8x24xf32>
    %10 = arith.addf %6, %9 : vector<8x24xf32>
    %11 = vector.extract_strided_slice %10 {offsets = [0, 0], sizes = [8, 8], strides = [1, 1]} : vector<8x24xf32> to vector<8x8xf32>
    %12 = vector.extract_strided_slice %10 {offsets = [0, 8], sizes = [8, 8], strides = [1, 1]} : vector<8x24xf32> to vector<8x8xf32>
    %13 = vector.extract_strided_slice %10 {offsets = [0, 16], sizes = [8, 8], strides = [1, 1]} : vector<8x24xf32> to vector<8x8xf32>
    %cst_11 = arith.constant dense<0.000000e+00> : vector<8x8xf32>
    %14 = tpu.matmul %11, %12, %cst_11 {dimension_numbers = #tpu.dot_dimension_numbers<[1], [1], [0], [0], [0, 0, 1, 0], [], []>} : vector<8x8xf32>, vector<8x8xf32>, vector<8x8xf32> -> vector<8x8xf32>
    %15 = vector.broadcast %3 : vector<1x8xf32> to vector<8x8xf32>
    %16 = arith.addf %14, %15 : vector<8x8xf32>
    %cst_12 = arith.constant dense<0xFF800000> : vector<8xf32>
    %17 = vector.multi_reduction <maximumf>, %16, %cst_12 [1] : vector<8x8xf32> to vector<8xf32>
    %18 = vector.shape_cast %17 : vector<8xf32> to vector<8x1xf32>
    %19 = vector.broadcast %18 : vector<8x1xf32> to vector<8x8xf32>
    %20 = arith.subf %16, %19 : vector<8x8xf32>
    %21 = math.exp %20 : vector<8x8xf32>
    %cst_13 = arith.constant dense<0.000000e+00> : vector<8xf32>
    %22 = vector.multi_reduction <add>, %21, %cst_13 [1] : vector<8x8xf32> to vector<8xf32>
    %23 = vector.shape_cast %22 : vector<8xf32> to vector<8x1xf32>
    %24 = vector.broadcast %23 : vector<8x1xf32> to vector<8x8xf32>
    %25 = arith.divf %21, %24 : vector<8x8xf32>
    %cst_14 = arith.constant dense<0.000000e+00> : vector<8x8xf32>
    %26 = tpu.matmul %25, %13, %cst_14 {dimension_numbers = #tpu.dot_dimension_numbers<[1], [0], [0], [1], [0, 0, 1, 1], [], []>} : vector<8x8xf32>, vector<8x8xf32>, vector<8x8xf32> -> vector<8x8xf32>
    %c0_15 = arith.constant 0 : index
    %c0_16 = arith.constant 0 : index
    %c0_17 = arith.constant 0 : index
    %c0_18 = arith.constant 0 : index
    %27 = vector.load %arg6[%c0_15, %c0_16, %c0_17, %c0_18] : memref<1x1x8x8xf32, #tpu.memory_space<vmem>>, vector<1x1x8x8xf32>
    %28 = vector.shape_cast %27 : vector<1x1x8x8xf32> to vector<8x8xf32>
    %29 = vector.shape_cast %26 : vector<8x8xf32> to vector<1x1x8x8xf32>
    tpu.vector_store %arg6[%c0_15, %c0_16, %c0_17, %c0_18], %29 {strides = array<i32>} : memref<1x1x8x8xf32, #tpu.memory_space<vmem>>, vector<1x1x8x8xf32>,
    return
  }
  func.func @transform_0(%arg0: i32, %arg1: i32) -> (i32, i32, i32) {
    %c0_i32 = arith.constant 0 : i32
    %c0_i32_0 = arith.constant 0 : i32
    %c0_i32_1 = arith.constant 0 : i32
    return %arg0, %c0_i32, %c0_i32_0 : i32, i32, i32
  }
  func.func @transform_1(%arg0: i32, %arg1: i32) -> (i32, i32, i32) {
    %c0_i32 = arith.constant 0 : i32
    %c0_i32_0 = arith.constant 0 : i32
    %c0_i32_1 = arith.constant 0 : i32
    return %arg0, %c0_i32, %c0_i32_0 : i32, i32, i32
  }
  func.func @transform_2(%arg0: i32, %arg1: i32) -> (i32, i32, i32) {
    %c0_i32 = arith.constant 0 : i32
    %c0_i32_0 = arith.constant 0 : i32
    %c0_i32_1 = arith.constant 0 : i32
    return %arg1, %c0_i32, %c0_i32_0 : i32, i32, i32
  }
  func.func @transform_3(%arg0: i32, %arg1: i32) -> (i32, i32, i32) {
    %c0_i32 = arith.constant 0 : i32
    %c0_i32_0 = arith.constant 0 : i32
    %c0_i32_1 = arith.constant 0 : i32
    return %arg1, %c0_i32, %c0_i32_0 : i32, i32, i32
  }
  func.func @transform_4(%arg0: i32, %arg1: i32) -> (i32, i32, i32, i32) {
    %c0_i32 = arith.constant 0 : i32
    %c0_i32_0 = arith.constant 0 : i32
    %c0_i32_1 = arith.constant 0 : i32
    return %arg0, %arg1, %c0_i32, %c0_i32_0 : i32, i32, i32, i32
  }
}

</mosaic_0001>

<llo_original>
// kernel: tpu_custom_call.1
$region0: #{tpu_custom_call.1}
  #allocation0 [shape = 'u32[]', space=smem, size = 0x4, offset = 0x4, fixed_abs, tag = 'smem constant byte address 0x4 - core index']
  #allocation1 [shape = 'u32[144,128]{1,0:T(1,128)}', space=vmem, size = 0x12000, scoped, tag = 'internal scratch']
  %s0 = inlined_call_operand.vmem [shape: f32[2,8,32], index: 0, kind: input, shape index: {}]
  %s1 = inlined_call_operand.vmem [shape: f32[2,1,8], index: 1, kind: input, shape index: {}]
  %s2 = inlined_call_operand.vmem [shape: f32[4,32,24], index: 2, kind: input, shape index: {}]
  %s3 = inlined_call_operand.vmem [shape: f32[4,1,24], index: 3, kind: input, shape index: {}]
  %s4 = inlined_call_operand.hbm [shape: f32[2,4,8,8], index: 4, kind: output, shape index: {}]
  %s5 = sld [smem:[#allocation0]]
  $region49: #{tpu_custom_call.1} parent=0
    _
  %s7 = ssub.s32 1, %s5
  %s8 = scalar_select 0, %s7, %s5
  $region1: #{tpu_custom_call.1} parent=0
    #allocation2 [shape = 'u8[8192]{0}', space=vmem, size = 0x2000, scoped, tag = 'output window, operand 0']
    #allocation3 [shape = 's32[2]{0}', space=sflag, size = 0x8, scoped, tag = 'scoped memory for tpu_custom_call.1']
    %9 = vsyncpa [#allocation3], 0
    %s10 = scalar_lea.sflag [#allocation3], 1
    %11 = vsyncpa %s10, 0
    loop: start=0, step=1, limit=10
    $region2: #{tpu_custom_call.1} parent=1 // loop_pre_header
      _
    $region3: #{tpu_custom_call.1} parent=1 // loop_header
      %s13 = sphi 0, %s17
      %p14 = scmp.ge.s32.totalorder %s13, 10
      %s20 = sphi 0, %s32
      %s21 = sphi 0, %s28
      %s22 = sphi 0, %s20
      %s23 = sphi 0, %s21
      %s24 = sphi 0, %s22
      %s25 = sphi 0, %s23
      %s35 = sphi 0, %s37
      %s38 = sphi 0, %s35
      %s39 = sphi 0, %s38
      %s55 = sphi 0, %s39
      %s61 = sphi 0, %s63
      %s64 = sphi 0, %s61
      %s65 = sphi 0, %s64
      %s81 = sphi 0, %s65
      %s87 = sphi 0, %s89
      %s90 = sphi 0, %s87
      %s91 = sphi 0, %s90
      %s107 = sphi 0, %s91
      %s113 = sphi 0, %s115
      %s116 = sphi 0, %s113
      %s117 = sphi 0, %s116
      %s133 = sphi 0, %s117
      %s141 = sphi 0, %s143
      %s144 = sphi 0, %s141
      %s145 = sphi 0, %s144
      %s161 = sphi 0, %s145
    $region4: #{tpu_custom_call.1} parent=1 // loop_header_branch
      %16 = sbr.rel (%p14) target = $region8
    $region5: #{tpu_custom_call.1} parent=1 // loop_body
      %s18 = ssub.s32 %s13, 1
      %s19 = ssub.s32 %s13, 2
      %s26 = sadd.s32 1, %s21
      %p27 = scmp.ge.s32.totalorder %s26, 4
      %s28 = scalar_select %p27, 0, %s26
      %s29 = sadd.s32 1, %s20
      %s30 = scalar_select %p27, %s29, %s20
      %p31 = scmp.ge.s32.totalorder %s30, 2
      %s32 = scalar_select %p31, 0, %s30
      %s33 = ssub.s32 %s20, %s32
      %p34 = scmp.eq.s32.totalorder %s33, 0
      %s36 = sadd.s32 %s35, 1
      %s37 = scalar_select %p34, %s35, %s36
      %p40 = pneg %p34
      %p41 = scmp.eq.s32.totalorder %s13, 7
      %p42 = por %p40, %p41
      %p43 = scmp.ne.s32.totalorder %s35, %s38
      %p44 = scmp.eq.s32.totalorder %s13, 0
      %p45 = por %p43, %p44
      %p46 = scmp.ne.s32.totalorder %s35, %s38
      %p47 = scmp.eq.s32.totalorder %s18, 7
      %p48 = por %p46, %p47
      %p49 = scmp.ne.s32.totalorder %s38, %s39
      %p50 = scmp.eq.s32.totalorder %s18, 0
      %p51 = por %p49, %p50
      %p52 = scmp.ne.s32.totalorder %s38, %s39
      %p53 = scmp.eq.s32.totalorder %s19, 7
      %p54 = por %p52, %p53
      %p56 = scmp.ne.s32.totalorder %s39, %s55
      %p57 = scmp.eq.s32.totalorder %s19, 0
      %p58 = por %p56, %p57
      %s59 = ssub.s32 %s20, %s32
      %p60 = scmp.eq.s32.totalorder %s59, 0
      %s62 = sadd.s32 %s61, 1
      %s63 = scalar_select %p60, %s61, %s62
      %p66 = pneg %p60
      %p67 = scmp.eq.s32.totalorder %s13, 7
      %p68 = por %p66, %p67
      %p69 = scmp.ne.s32.totalorder %s61, %s64
      %p70 = scmp.eq.s32.totalorder %s13, 0
      %p71 = por %p69, %p70
      %p72 = scmp.ne.s32.totalorder %s61, %s64
      %p73 = scmp.eq.s32.totalorder %s18, 7
      %p74 = por %p72, %p73
      %p75 = scmp.ne.s32.totalorder %s64, %s65
      %p76 = scmp.eq.s32.totalorder %s18, 0
      %p77 = por %p75, %p76
      %p78 = scmp.ne.s32.totalorder %s64, %s65
      %p79 = scmp.eq.s32.totalorder %s19, 7
      %p80 = por %p78, %p79
      %p82 = scmp.ne.s32.totalorder %s65, %s81
      %p83 = scmp.eq.s32.totalorder %s19, 0
      %p84 = por %p82, %p83
      %s85 = ssub.s32 %s21, %s28
      %p86 = scmp.eq.s32.totalorder %s85, 0
      %s88 = sadd.s32 %s87, 1
      %s89 = scalar_select %p86, %s87, %s88
      %p92 = pneg %p86
      %p93 = scmp.eq.s32.totalorder %s13, 7
      %p94 = por %p92, %p93
      %p95 = scmp.ne.s32.totalorder %s87, %s90
      %p96 = scmp.eq.s32.totalorder %s13, 0
      %p97 = por %p95, %p96
      %p98 = scmp.ne.s32.totalorder %s87, %s90
      %p99 = scmp.eq.s32.totalorder %s18, 7
      %p100 = por %p98, %p99
      %p101 = scmp.ne.s32.totalorder %s90, %s91
      %p102 = scmp.eq.s32.totalorder %s18, 0
      %p103 = por %p101, %p102
      %p104 = scmp.ne.s32.totalorder %s90, %s91
      %p105 = scmp.eq.s32.totalorder %s19, 7
      %p106 = por %p104, %p105
      %p108 = scmp.ne.s32.totalorder %s91, %s107
      %p109 = scmp.eq.s32.totalorder %s19, 0
      %p110 = por %p108, %p109
      %s111 = ssub.s32 %s21, %s28
      %p112 = scmp.eq.s32.totalorder %s111, 0
      %s114 = sadd.s32 %s113, 1
      %s115 = scalar_select %p112, %s113, %s114
      %p118 = pneg %p112
      %p119 = scmp.eq.s32.totalorder %s13, 7
      %p120 = por %p118, %p119
      %p121 = scmp.ne.s32.totalorder %s113, %s116
      %p122 = scmp.eq.s32.totalorder %s13, 0
      %p123 = por %p121, %p122
      %p124 = scmp.ne.s32.totalorder %s113, %s116
      %p125 = scmp.eq.s32.totalorder %s18, 7
      %p126 = por %p124, %p125
      %p127 = scmp.ne.s32.totalorder %s116, %s117
      %p128 = scmp.eq.s32.totalorder %s18, 0
      %p129 = por %p127, %p128
      %p130 = scmp.ne.s32.totalorder %s116, %s117
      %p131 = scmp.eq.s32.totalorder %s19, 7
      %p132 = por %p130, %p131
      %p134 = scmp.ne.s32.totalorder %s117, %s133
      %p135 = scmp.eq.s32.totalorder %s19, 0
      %p136 = por %p134, %p135
      %s137 = ssub.s32 %s20, %s32
      %s138 = ssub.s32 %s21, %s28
      %s139 = sor.u32 %s137, %s138
      %p140 = scmp.eq.s32.totalorder %s139, 0
      %s142 = sadd.s32 %s141, 1
      %s143 = scalar_select %p140, %s141, %s142
      %p146 = pneg %p140
      %p147 = scmp.eq.s32.totalorder %s13, 7
      %p148 = por %p146, %p147
      %p149 = scmp.ne.s32.totalorder %s141, %s144
      %p150 = scmp.eq.s32.totalorder %s13, 0
      %p151 = por %p149, %p150
      %p152 = scmp.ne.s32.totalorder %s141, %s144
      %p153 = scmp.eq.s32.totalorder %s18, 7
      %p154 = por %p152, %p153
      %p155 = scmp.ne.s32.totalorder %s144, %s145
      %p156 = scmp.eq.s32.totalorder %s18, 0
      %p157 = por %p155, %p156
      %p158 = scmp.ne.s32.totalorder %s144, %s145
      %p159 = scmp.eq.s32.totalorder %s19, 7
      %p160 = por %p158, %p159
      %p162 = scmp.ne.s32.totalorder %s145, %s161
      %p163 = scmp.eq.s32.totalorder %s19, 0
      %p164 = por %p162, %p163
      %p165 = scmp.le.s32.totalorder 1, %s13
      %p166 = scmp.lt.s32.totalorder %s13, 9
      %p167 = pnand %p165, %p166
      %p168 = pneg %p167
      // Predicated region
      $region9: #{tpu_custom_call.1} parent=5 // pred_check
        _
      $region10: #{tpu_custom_call.1} parent=5 // pred_check_branch
        %170 = sbr.rel (%p167) target = $region12
      $region11: #{tpu_custom_call.1} parent=5 // pred_region
        %s171 = ssub.s32 %s13, 1
      $region12: #{tpu_custom_call.1} parent=5 // pred_fallthru
        _
      %p172 = scmp.lt.s32.totalorder %s13, 8
      // Predicated region
      $region13: #{tpu_custom_call.1} parent=5 // pred_check
        %p173 = pneg %p172
      $region14: #{tpu_custom_call.1} parent=5 // pred_check_branch
        %175 = sbr.rel (%p173) target = $region16
      $region15: #{tpu_custom_call.1} parent=5 // pred_region
        // Predicated region
        $region17: #{tpu_custom_call.1} parent=15 // pred_check
          %p176 = pneg %p45
        $region18: #{tpu_custom_call.1} parent=15 // pred_check_branch
          %178 = sbr.rel (%p176) target = $region20
        $region19: #{tpu_custom_call.1} parent=15 // pred_region
          %p179 = scmp.lt.s32.totalorder %s20, 1
          %s180 = scalar_select %p179, %s20, 1
          %s181 = smul.addr %s180, 8
          %s182 = scalar_lea.vmem %s0, %s181
        $region20: #{tpu_custom_call.1} parent=15 // pred_fallthru
          _
        // Predicated region
        $region21: #{tpu_custom_call.1} parent=15 // pred_check
          %p183 = pneg %p71
        $region22: #{tpu_custom_call.1} parent=15 // pred_check_branch
          %185 = sbr.rel (%p183) target = $region24
        $region23: #{tpu_custom_call.1} parent=15 // pred_region
          %p186 = scmp.lt.s32.totalorder %s20, 1
          %s187 = scalar_select %p186, %s20, 1
          %s188 = scalar_lea.vmem %s1, %s187
        $region24: #{tpu_custom_call.1} parent=15 // pred_fallthru
          _
        // Predicated region
        $region25: #{tpu_custom_call.1} parent=15 // pred_check
          %p189 = pneg %p97
        $region26: #{tpu_custom_call.1} parent=15 // pred_check_branch
          %191 = sbr.rel (%p189) target = $region28
        $region27: #{tpu_custom_call.1} parent=15 // pred_region
          %p192 = scmp.lt.s32.totalorder %s21, 3
          %s193 = scalar_select %p192, %s21, 3
          %s194 = smul.addr %s193, 4
          %s195 = smul.addr %s194, 8
          %s196 = scalar_lea.vmem %s2, %s195
        $region28: #{tpu_custom_call.1} parent=15 // pred_fallthru
          _
        // Predicated region
        $region29: #{tpu_custom_call.1} parent=15 // pred_check
          %p197 = pneg %p123
        $region30: #{tpu_custom_call.1} parent=15 // pred_check_branch
          %199 = sbr.rel (%p197) target = $region32
        $region31: #{tpu_custom_call.1} parent=15 // pred_region
          %p200 = scmp.lt.s32.totalorder %s21, 3
          %s201 = scalar_select %p200, %s21, 3
          %s202 = scalar_lea.vmem %s3, %s201
        $region32: #{tpu_custom_call.1} parent=15 // pred_fallthru
          _
      $region16: #{tpu_custom_call.1} parent=5 // pred_fallthru
        _
      %p203 = scmp.le.s32.totalorder 1, %s13
      %p204 = scmp.lt.s32.totalorder %s13, 9
      %p205 = pnand %p203, %p204
      %p206 = pneg %p205
      // Predicated region
      $region33: #{tpu_custom_call.1} parent=5 // pred_check
        _
      $region34: #{tpu_custom_call.1} parent=5 // pred_check_branch
        %208 = sbr.rel (%p205) target = $region36
      $region35: #{tpu_custom_call.1} parent=5 // pred_region
        %s209 = ssub.s32 %s13, 1
        %p210 = scmp.lt.s32.totalorder %s22, 1
        %s211 = scalar_select %p210, %s22, 1
        %s212 = smul.addr %s211, 8
        %s213 = scalar_lea.vmem %s0, %s212
        %p214 = pneg %p51
        %p215 = pneg %p48
        %p216 = scmp.lt.s32.totalorder %s22, 1
        %s217 = scalar_select %p216, %s22, 1
        %s218 = scalar_lea.vmem %s1, %s217
        %p219 = pneg %p77
        %p220 = pneg %p74
        %p221 = scmp.lt.s32.totalorder %s23, 3
        %s222 = scalar_select %p221, %s23, 3
        %s223 = smul.addr %s222, 4
        %s224 = smul.addr %s223, 8
        %s225 = scalar_lea.vmem %s2, %s224
        %p226 = pneg %p103
        %p227 = pneg %p100
        %p228 = scmp.lt.s32.totalorder %s23, 3
        %s229 = scalar_select %p228, %s23, 3
        %s230 = scalar_lea.vmem %s3, %s229
        %p231 = pneg %p129
        %p232 = pneg %p126
        %p233 = pneg %p157
        %p234 = pneg %p154
        %s235 = sand.u32 %s144, 1
        %s236 = scalar_lea.sflag [#allocation3], %s235
        %s237 = sand.u32 %s144, 1
        %s238 = smul.addr %s237, 8
        %s239 = scalar_lea.vmem [#allocation2], %s238
        %p240 = scmp.lt.s32.totalorder %s22, 1
        %s241 = scalar_select %p240, %s22, 1
        %s242 = smul.addr %s241, 8
        %s243 = scalar_lea.vmem %s0, %s242
        %p244 = scmp.lt.s32.totalorder %s22, 1
        %s245 = scalar_select %p244, %s22, 1
        %s246 = scalar_lea.vmem %s1, %s245
        %p247 = scmp.lt.s32.totalorder %s23, 3
        %s248 = scalar_select %p247, %s23, 3
        %s249 = smul.addr %s248, 4
        %s250 = smul.addr %s249, 8
        %s251 = scalar_lea.vmem %s2, %s250
        %p252 = scmp.lt.s32.totalorder %s23, 3
        %s253 = scalar_select %p252, %s23, 3
        %s254 = scalar_lea.vmem %s3, %s253
        %v255 = vld [vmem:[%s243] sm:$0xff]
        %v256 = vld [vmem:[%s246] sm:$0x1]
        %v257 = vld [vmem:[%s251] sm:$0xff]
        %v258 = vld [vmem:[%s251 + $0x8] sm:$0xff]
        %v259 = vld [vmem:[%s251 + $0x10] sm:$0xff]
        %v260 = vld [vmem:[%s251 + $0x18] sm:$0xff]
        %v261 = vld [vmem:[%s254] sm:$0x1]
        %v263 = vlaneseq
        %v264 = vshrl.u32 %v263, 7
        %v265 = vsub.s32 0, %v264
        %v266 = vrot.slane %v261, %v265
        %vm268 = vcmask 261120
        %v270 = vsel %vm268, %v255, 0
        %272 = vmatprep.subr.mxu0 0.0
        %273 = vmatpush1.msra.mxu0 0.0
        %274 = vmatprep.subr.mxu0 0.0
        %275 = vmatpush1.msra.mxu0 0.0
        %276 = vmatprep.subr.mxu0 0.0
        %277 = vmatpush1.msra.mxu0 0.0
        %278 = vmatprep.subr.mxu0 0.0
        %279 = vmatpush1.msra.mxu0 0.0
        %280 = vmatprep.subr.mxu0 0.0
        %281 = vmatpush1.msra.mxu0 0.0
        %282 = vmatprep.subr.mxu0 0.0
        %283 = vmatpush1.msra.mxu0 0.0
        %284 = vmatprep.subr.mxu0 0.0
        %285 = vmatpush1.msra.mxu0 0.0
        %286 = vmatprep.subr.mxu0 0.0
        %287 = vmatpush1.msra.mxu0 0.0
        %288 = vmatprep.subr.mxu0 0.0
        %289 = vmatpush1.msra.mxu0 0.0
        %290 = vmatprep.subr.mxu0 0.0
        %291 = vmatpush1.msra.mxu0 0.0
        %292 = vmatprep.subr.mxu0 0.0
        %293 = vmatpush1.msra.mxu0 0.0
        %294 = vmatprep.subr.mxu0 0.0
        %295 = vmatpush1.msra.mxu0 0.0
        %296 = vmatprep.subr.mxu0 0.0
        %297 = vmatpush1.msra.mxu0 %v260
        %298 = vmatprep.subr.mxu0 0.0
        %299 = vmatpush1.msra.mxu0 %v259
        %300 = vmatprep.subr.mxu0 0.0
        %301 = vmatpush1.msra.mxu0 %v258
        %302 = vmatprep.subr.mxu0 0.0
        %303 = vmatpush1.msra.mxu0 %v257
        %304 = vmatprep.subr.mxu0 0.0
        %305 = vmatpush2.msra.mxu0 0.0
        %306 = vmatprep.subr.mxu0 0.0
        %307 = vmatpush2.msra.mxu0 0.0
        %308 = vmatprep.subr.mxu0 0.0
        %309 = vmatpush2.msra.mxu0 0.0
        %310 = vmatprep.subr.mxu0 0.0
        %311 = vmatpush2.msra.mxu0 0.0
        %312 = vmatprep.subr.mxu0 0.0
        %313 = vmatpush2.msra.mxu0 0.0
        %314 = vmatprep.subr.mxu0 0.0
        %315 = vmatpush2.msra.mxu0 0.0
        %316 = vmatprep.subr.mxu0 0.0
        %317 = vmatpush2.msra.mxu0 0.0
        %318 = vmatprep.subr.mxu0 0.0
        %319 = vmatpush2.msra.mxu0 0.0
        %320 = vmatprep.subr.mxu0 0.0
        %321 = vmatpush2.msra.mxu0 0.0
        %322 = vmatprep.subr.mxu0 0.0
        %323 = vmatpush2.msra.mxu0 0.0
        %324 = vmatprep.subr.mxu0 0.0
        %325 = vmatpush2.msra.mxu0 0.0
        %326 = vmatprep.subr.mxu0 0.0
        %327 = vmatpush2.msra.mxu0 0.0
        %328 = vmatprep.subr.mxu0 0.0
        %329 = vmatpush2.msra.mxu0 0.0
        %330 = vmatprep.subr.mxu0 0.0
        %331 = vmatpush2.msra.mxu0 0.0
        %332 = vmatprep.subr.mxu0 0.0
        %333 = vmatpush2.msra.mxu0 0.0
        %334 = vmatprep.subr.mxu0 0.0
        %335 = vmatpush2.msra.mxu0 0.0
        %336 = vmatprep.mubr.f32.mxu0 0.0
        %337 = vmatmul.mubr.f32.gmra.mxu0 %v270
        %v338 = vpop.f32.mrf.mxu0
        %v339 = vadd.f32 %v266, %v338
        %v340 = vpop.f32.mrf.mxu0
        %341 = vdwg.mxu0
        %v343 = vlaneseq
        %v344 = vshrl.u32 %v343, 7
        %v345 = vsub.s32 0, %v344
        %v346 = vrot.slane %v256, %v345
        %349 = vrot.lane.b32.xlu0 %v339, 120
        %v350 = vpop.permute.xlu0 %349
        %vm351 = vcmask 64512
        %v352 = vsel %vm351, %v339, 0
        %v354 = vsel %vm351, %v350, 0
        %356 = vmatprep.subr.mxu0 0.0
        %357 = vmatpush1.xpose.msra.mxu0 0.0
        %358 = vmatprep.subr.mxu0 0.0
        %359 = vmatpush1.xpose.msra.mxu0 0.0
        %360 = vmatprep.subr.mxu0 0.0
        %361 = vmatpush1.xpose.msra.mxu0 0.0
        %362 = vmatprep.subr.mxu0 0.0
        %363 = vmatpush1.xpose.msra.mxu0 0.0
        %364 = vmatprep.subr.mxu0 0.0
        %365 = vmatpush1.xpose.msra.mxu0 0.0
        %366 = vmatprep.subr.mxu0 0.0
        %367 = vmatpush1.xpose.msra.mxu0 0.0
        %368 = vmatprep.subr.mxu0 0.0
        %369 = vmatpush1.xpose.msra.mxu0 0.0
        %370 = vmatprep.subr.mxu0 0.0
        %371 = vmatpush1.xpose.msra.mxu0 0.0
        %372 = vmatprep.subr.mxu0 0.0
        %373 = vmatpush1.xpose.msra.mxu0 0.0
        %374 = vmatprep.subr.mxu0 0.0
        %375 = vmatpush1.xpose.msra.mxu0 0.0
        %376 = vmatprep.subr.mxu0 0.0
        %377 = vmatpush1.xpose.msra.mxu0 0.0
        %378 = vmatprep.subr.mxu0 0.0
        %379 = vmatpush1.xpose.msra.mxu0 0.0
        %380 = vmatprep.subr.mxu0 0.0
        %381 = vmatpush1.xpose.msra.mxu0 0.0
        %382 = vmatprep.subr.mxu0 0.0
        %383 = vmatpush1.xpose.msra.mxu0 0.0
        %384 = vmatprep.subr.mxu0 0.0
        %385 = vmatpush1.xpose.msra.mxu0 0.0
        %386 = vmatprep.subr.mxu0 0.0
        %387 = vmatpush1.xpose.msra.mxu0 %v354
        %388 = vmatprep.subr.mxu0 0.0
        %389 = vmatpush2.xpose.msra.mxu0 0.0
        %390 = vmatprep.subr.mxu0 0.0
        %391 = vmatpush2.xpose.msra.mxu0 0.0
        %392 = vmatprep.subr.mxu0 0.0
        %393 = vmatpush2.xpose.msra.mxu0 0.0
        %394 = vmatprep.subr.mxu0 0.0
        %395 = vmatpush2.xpose.msra.mxu0 0.0
        %396 = vmatprep.subr.mxu0 0.0
        %397 = vmatpush2.xpose.msra.mxu0 0.0
        %398 = vmatprep.subr.mxu0 0.0
        %399 = vmatpush2.xpose.msra.mxu0 0.0
        %400 = vmatprep.subr.mxu0 0.0
        %401 = vmatpush2.xpose.msra.mxu0 0.0
        %402 = vmatprep.subr.mxu0 0.0
        %403 = vmatpush2.xpose.msra.mxu0 0.0
        %404 = vmatprep.subr.mxu0 0.0
        %405 = vmatpush2.xpose.msra.mxu0 0.0
        %406 = vmatprep.subr.mxu0 0.0
        %407 = vmatpush2.xpose.msra.mxu0 0.0
        %408 = vmatprep.subr.mxu0 0.0
        %409 = vmatpush2.xpose.msra.mxu0 0.0
        %410 = vmatprep.subr.mxu0 0.0
        %411 = vmatpush2.xpose.msra.mxu0 0.0
        %412 = vmatprep.subr.mxu0 0.0
        %413 = vmatpush2.xpose.msra.mxu0 0.0
        %414 = vmatprep.subr.mxu0 0.0
        %415 = vmatpush2.xpose.msra.mxu0 0.0
        %416 = vmatprep.subr.mxu0 0.0
        %417 = vmatpush2.xpose.msra.mxu0 0.0
        %418 = vmatprep.subr.mxu0 0.0
        %419 = vmatpush2.xpose.msra.mxu0 0.0
        %420 = vmatprep.mubr.f32.mxu0 0.0
        %421 = vmatmul.mubr.f32.gmra.mxu0 %v352
        %v422 = vpop.f32.mrf.mxu0
        %v423 = vadd.f32 %v346, %v422
        %v424 = vpop.f32.mrf.mxu0
        %425 = vdwg.mxu0
        %v426 = vsel %vm351, %v423, -inf
        %427 = vmax.xlane.f32.xlu0 %v426
        %v428 = vpop.xlane.xlu0 %427
        %v429 = vsub.f32 %v423, %v428
        %v430 = vmul.f32 %v429, 1.442695
        %v431 = vpow.pop %v430
        %v432 = vsel %vm351, %v431, 0.0
        %433 = vadd.xlane.f32.xlu0 %v432
        %v434 = vpop.xlane.xlu0 %433
        %v435 = vrcp.pop %v434
        %v436 = vmul.f32 %v431, %v435
        %437 = vrot.lane.b32.xlu0 %v339, 112
        %v438 = vpop.permute.xlu0 %437
        %v441 = vsel %vm351, %v436, 0
        %443 = vmatprep.subr.mxu0 0.0
        %444 = vmatpush1.msra.mxu0 0.0
        %445 = vmatprep.subr.mxu0 0.0
        %446 = vmatpush1.msra.mxu0 0.0
        %447 = vmatprep.subr.mxu0 0.0
        %448 = vmatpush1.msra.mxu0 0.0
        %449 = vmatprep.subr.mxu0 0.0
        %450 = vmatpush1.msra.mxu0 0.0
        %451 = vmatprep.subr.mxu0 0.0
        %452 = vmatpush1.msra.mxu0 0.0
        %453 = vmatprep.subr.mxu0 0.0
        %454 = vmatpush1.msra.mxu0 0.0
        %455 = vmatprep.subr.mxu0 0.0
        %456 = vmatpush1.msra.mxu0 0.0
        %457 = vmatprep.subr.mxu0 0.0
        %458 = vmatpush1.msra.mxu0 0.0
        %459 = vmatprep.subr.mxu0 0.0
        %460 = vmatpush1.msra.mxu0 0.0
        %461 = vmatprep.subr.mxu0 0.0
        %462 = vmatpush1.msra.mxu0 0.0
        %463 = vmatprep.subr.mxu0 0.0
        %464 = vmatpush1.msra.mxu0 0.0
        %465 = vmatprep.subr.mxu0 0.0
        %466 = vmatpush1.msra.mxu0 0.0
        %467 = vmatprep.subr.mxu0 0.0
        %468 = vmatpush1.msra.mxu0 0.0
        %469 = vmatprep.subr.mxu0 0.0
        %470 = vmatpush1.msra.mxu0 0.0
        %471 = vmatprep.subr.mxu0 0.0
        %472 = vmatpush1.msra.mxu0 0.0
        %473 = vmatprep.subr.mxu0 0.0
        %474 = vmatpush1.msra.mxu0 %v438
        %475 = vmatprep.subr.mxu0 0.0
        %476 = vmatpush2.msra.mxu0 0.0
        %477 = vmatprep.subr.mxu0 0.0
        %478 = vmatpush2.msra.mxu0 0.0
        %479 = vmatprep.subr.mxu0 0.0
        %480 = vmatpush2.msra.mxu0 0.0
        %481 = vmatprep.subr.mxu0 0.0
        %482 = vmatpush2.msra.mxu0 0.0
        %483 = vmatprep.subr.mxu0 0.0
        %484 = vmatpush2.msra.mxu0 0.0
        %485 = vmatprep.subr.mxu0 0.0
        %486 = vmatpush2.msra.mxu0 0.0
        %487 = vmatprep.subr.mxu0 0.0
        %488 = vmatpush2.msra.mxu0 0.0
        %489 = vmatprep.subr.mxu0 0.0
        %490 = vmatpush2.msra.mxu0 0.0
        %491 = vmatprep.subr.mxu0 0.0
        %492 = vmatpush2.msra.mxu0 0.0
        %493 = vmatprep.subr.mxu0 0.0
        %494 = vmatpush2.msra.mxu0 0.0
        %495 = vmatprep.subr.mxu0 0.0
        %496 = vmatpush2.msra.mxu0 0.0
        %497 = vmatprep.subr.mxu0 0.0
        %498 = vmatpush2.msra.mxu0 0.0
        %499 = vmatprep.subr.mxu0 0.0
        %500 = vmatpush2.msra.mxu0 0.0
        %501 = vmatprep.subr.mxu0 0.0
        %502 = vmatpush2.msra.mxu0 0.0
        %503 = vmatprep.subr.mxu0 0.0
        %504 = vmatpush2.msra.mxu0 0.0
        %505 = vmatprep.subr.mxu0 0.0
        %506 = vmatpush2.msra.mxu0 0.0
        %507 = vmatprep.mubr.f32.mxu0 0.0
        %508 = vmatmul.mubr.f32.gmra.mxu0 %v441
        %v509 = vpop.f32.mrf.mxu0
        %v510 = vadd.f32 0.0, %v509
        %v511 = vpop.f32.mrf.mxu0
        %512 = vdwg.mxu0
        %513 = vst.msk [vmem:[%s239] sm:$0xff] %vm351, %v510
        %s514 = sand.u32 %s144, 1
        %s515 = scalar_lea.sflag [#allocation3], %s514
        %s516 = sand.u32 %s144, 1
        %s517 = smul.addr %s516, 8
        %s518 = scalar_lea.vmem [#allocation2], %s517
        // Predicated region
        $region37: #{tpu_custom_call.1} parent=35 // pred_check
          %p519 = pneg %p154
        $region38: #{tpu_custom_call.1} parent=35 // pred_check_branch
          %521 = sbr.rel (%p519) target = $region40
        $region39: #{tpu_custom_call.1} parent=35 // pred_region
          %s523 = ssub.s32 128, 128
          %524 = vsyncadd %s515, %s523
          %s525 = smul.addr %s22, 4
          %s526 = sadd.s32 %s23, %s525
          %s527 = smul.addr %s526, 128
          %s528 = scalar_lea.hbm %s4, %s527
          %s530 = sshll.u32 %s518, 4
          %s531 = int_to_ptr.vmem [resolvable:$true] %s530
          %533 = dma.vmem_to_hbm [thread:$0]  %s531, 128, %s528, %s515
        $region40: #{tpu_custom_call.1} parent=35 // pred_fallthru
          _
      $region36: #{tpu_custom_call.1} parent=5 // pred_fallthru
        _
      %p534 = scmp.le.s32.totalorder 2, %s13
      // Predicated region
      $region41: #{tpu_custom_call.1} parent=5 // pred_check
        %p535 = pneg %p534
      $region42: #{tpu_custom_call.1} parent=5 // pred_check_branch
        %537 = sbr.rel (%p535) target = $region44
      $region43: #{tpu_custom_call.1} parent=5 // pred_region
        %s538 = ssub.s32 %s13, 2
        // Predicated region
        $region45: #{tpu_custom_call.1} parent=43 // pred_check
          %p539 = pneg %p160
        $region46: #{tpu_custom_call.1} parent=43 // pred_check_branch
          %541 = sbr.rel (%p539) target = $region48
        $region47: #{tpu_custom_call.1} parent=43 // pred_region
          %s542 = sand.u32 %s145, 1
          %s543 = scalar_lea.sflag [#allocation3], %s542
          %s544 = sand.u32 %s145, 1
          %s545 = smul.addr %s544, 8
          %s546 = scalar_lea.vmem [#allocation2], %s545
          %547 = dma.done %s543, 128
        $region48: #{tpu_custom_call.1} parent=43 // pred_fallthru
          _
      $region44: #{tpu_custom_call.1} parent=5 // pred_fallthru
        _
    $region6: #{tpu_custom_call.1} parent=1 // loop_footer
      %s17 = sadd.s32 1, %s13
    $region7: #{tpu_custom_call.1} parent=1 // loop_footer_branch
      %12 = sbr.rel target = $region3
    $region8: #{tpu_custom_call.1} parent=1 // loop_exit
      _
    %548 = vsyncpa [#allocation3], 1
    %s549 = scalar_lea.sflag [#allocation3], 1
    %550 = vsyncpa %s549, 1

</llo_original>
